<compile_context>
chip_gen: v7x
topology: tpu7x:2x2x1
jax: 0.10.0
libtpu: 0.0.40
codegen_flags: <defaults>
</compile_context>

<pallas_src>
import jax
import jax.numpy as jnp
from jax.experimental import pallas as pl
from jax.experimental.pallas import tpu as pltpu


def _cdiv(a, b):
    return -(-a // b)


def _round_up(v, m):
    return (v + m - 1) // m * m


def _risan_linear_kernel(x_ref, w_ref, b_ref, f_ref):
    # x_ref: (TB, F) native dtype (VMEM, tiled over batch)
    # w_ref: (F, 1)  native dtype (VMEM, resident across the grid)
    # b_ref: (1, 1)  float32 (SMEM scalar)
    # f_ref: (TB, 1) float32
    # MXU dot (idle slot in this kernel) instead of VPU mul + XLU lane reduce.
    f_ref[...] = (
        jnp.dot(x_ref[...], w_ref[...], preferred_element_type=jnp.float32)
        + b_ref[0, 0])


def _risan_linear_kernel_ksplit(x_ref, w_ref, b_ref, f_ref, acc_ref):
    # Same as above but with a feature-axis (K) reduction grid dimension and a
    # small f32 accumulator in VMEM.  Used only for very wide feature inputs.
    k = pl.program_id(1)

    @pl.when(k == 0)
    def _init():
        acc_ref[...] = jnp.zeros_like(acc_ref)

    acc_ref[...] += jnp.dot(x_ref[...], w_ref[...],
                            preferred_element_type=jnp.float32)

    @pl.when(k == pl.num_programs(1) - 1)
    def _finalize():
        f_ref[...] = acc_ref[...] + b_ref[0, 0]


def _choose_tiles(B, F, itemsize, target_bytes):
    """Pick (TB, TK, grid_b, grid_k) for the x tiling."""
    # ---- K (feature) axis: keep full F unless even an 8-row tile would blow
    # the budget; then split into 128-multiple tiles that divide F exactly
    # (so no garbage columns ever enter the accumulation).
    if 8 * F * itemsize <= target_bytes:
        TK = F
    else:
        TK = F  # fallback (huge F with no suitable divisor): raise vmem limit
        k = (target_bytes // (8 * itemsize)) // 128 * 128
        while k >= 128:
            if F % k == 0:
                TK = k
                break
            k -= 128
    grid_k = F // TK

    # ---- B (batch) axis: biggest tile that keeps the x tile ~target_bytes.
    # Batch sits on the sublane axis now (output block is (TB, 1)), so TB only
    # needs to be a multiple of 8 (or equal to the full B).
    max_tb = max(8, (target_bytes // (TK * itemsize)) // 8 * 8)
    if B < 256 and B <= max_tb:
        TB = B                      # single full-array tile: no pad, no mask
    else:
        # >= 2 tiles so the "parallel" batch axis can use both TensorCores
        # on v7x (near-zero cost on single-TC v5e/v6e).
        TB = min(max_tb, _round_up(_cdiv(B, 2), 8))
    grid_b = _cdiv(B, TB)
    return TB, TK, grid_b, grid_k


def risan_forward(x, weight, bias, rho, *, _tile_bytes=4 << 20):
    """x: (B, F); weight: (1, F); bias: (1,); rho: (1,).

    Returns (f: (B, 1) float32, softplus(rho): (1,) float32).
    """
    B, F = x.shape
    itemsize = jnp.dtype(x.dtype).itemsize
    TB, TK, grid_b, grid_k = _choose_tiles(B, F, itemsize, _tile_bytes)

    # Weight pre-shaped (F, 1) and pre-cast in the wrapper: fed straight to the
    # MXU every tile with no in-kernel transpose or cast.  Bias stays in SMEM.
    w_col = weight.reshape(F, 1).astype(x.dtype)
    b_in = bias.reshape(1, 1).astype(jnp.float32)

    # Approximate VMEM need (double-buffered x is the only big consumer) plus
    # headroom; clamp to [16, 32] MiB which is within physical VMEM on
    # v5e/v6e (128 MiB) and v7x (64 MiB).
    vmem_need = (2 * TB * TK * itemsize + 2 * TK * itemsize
                 + 4 * TB * 4 + (4 << 20))
    vmem_limit = int(min(max(vmem_need, 16 << 20), 32 << 20))

    cost = pl.CostEstimate(
        flops=2 * B * F,
        transcendentals=0,
        bytes_accessed=B * F * itemsize + F * itemsize + B * 4)

    if grid_k == 1:
        f = pl.pallas_call(
            _risan_linear_kernel,
            out_shape=jax.ShapeDtypeStruct((B, 1), jnp.float32),
            grid_spec=pltpu.PrefetchScalarGridSpec(
                num_scalar_prefetch=0,
                grid=(grid_b,),
                in_specs=[
                    pl.BlockSpec((TB, F), lambda i: (i, 0)),   # x: batch tiles
                    pl.BlockSpec((F, 1), lambda i: (0, 0)),    # weight resident
                    pl.BlockSpec(memory_space=pltpu.MemorySpace.SMEM),  # bias
                ],
                out_specs=pl.BlockSpec((TB, 1), lambda i: (i, 0)),
            ),
            compiler_params=pltpu.CompilerParams(
                dimension_semantics=("parallel",),
                vmem_limit_bytes=vmem_limit),
            cost_estimate=cost,
        )(x, w_col, b_in)
    else:
        f = pl.pallas_call(
            _risan_linear_kernel_ksplit,
            out_shape=jax.ShapeDtypeStruct((B, 1), jnp.float32),
            grid_spec=pltpu.PrefetchScalarGridSpec(
                num_scalar_prefetch=0,
                grid=(grid_b, grid_k),
                in_specs=[
                    pl.BlockSpec((TB, TK), lambda i, k: (i, k)),
                    pl.BlockSpec((TK, 1), lambda i, k: (k, 0)),
                    pl.BlockSpec(memory_space=pltpu.MemorySpace.SMEM),
                ],
                out_specs=pl.BlockSpec((TB, 1), lambda i, k: (i, 0)),
                scratch_shapes=[pltpu.VMEM((TB, 1), jnp.float32)],
            ),
            compiler_params=pltpu.CompilerParams(
                dimension_semantics=("parallel", "arbitrary"),
                vmem_limit_bytes=vmem_limit),
            cost_estimate=cost,
        )(x, w_col, b_in)

    # softplus(rho): stable form, single scalar -> plain XLA (fuses for free).
    rho_f32 = rho.astype(jnp.float32)
    rho_sp = jnp.maximum(rho_f32, 0.0) + jnp.log1p(jnp.exp(-jnp.abs(rho_f32)))
    return f, rho_sp


def risan_infer(x, weight, bias, rho, beta=0.0):
    """Reproduces RISAN.infer: (batch,) int32 in {-1, 0, 1}."""
    f, rho_sp = risan_forward(x, weight, bias, rho)
    f_flat = f.reshape(-1)
    r = rho_sp[0]
    return ((f_flat > r + beta).astype(jnp.int32)
            - (f_flat < -r + beta).astype(jnp.int32))


if __name__ == "__main__":
    key = jax.random.PRNGKey(0)
    k_x, k_w, k_b, k_x2, k_x3, k_x4 = jax.random.split(key, 6)

    # Tolerance for the linear-output checks: generous enough to accommodate
    # whatever f32 pass-decomposition the MXU uses, tight enough to catch any
    # structural bug (wrong rows, missing bias, transposed weight).
    TOL = dict(atol=2e-2, rtol=2e-2)

    # --- Small shape consistent with the module: (batch, num_features). -----
    B, F = 8, 32
    x = jax.random.normal(k_x, (B, F), dtype=jnp.float32)
    bound = 1.0 / float(F) ** 0.5
    weight = jax.random.uniform(k_w, (1, F), minval=-bound, maxval=bound,
                                dtype=jnp.float32)
    bias = jax.random.uniform(k_b, (1,), minval=-bound, maxval=bound,
                              dtype=jnp.float32)
    rho = jnp.zeros((1,), dtype=jnp.float32)   # nn.Parameter(torch.zeros(1))

    f_out, rho_out = jax.block_until_ready(risan_forward(x, weight, bias, rho))
    f_ref = x @ weight.T + bias
    rho_ref = jnp.log1p(jnp.exp(rho))
    assert f_out.shape == (B, 1)
    assert rho_out.shape == (1,)
    assert jnp.allclose(f_out, f_ref, **TOL), "linear mismatch (small)"
    assert jnp.allclose(rho_out, rho_ref, atol=1e-6), "softplus mismatch"

    # --- Multi-tile path (grid_b = 2, exact tiling). -------------------------
    B2, F2 = 640, 96
    x2 = jax.random.normal(k_x2, (B2, F2), dtype=jnp.float32)
    k_w2, k_b2 = jax.random.split(k_w)
    bound2 = 1.0 / float(F2) ** 0.5
    w2 = jax.random.uniform(k_w2, (1, F2), minval=-bound2, maxval=bound2,
                            dtype=jnp.float32)
    b2 = jax.random.uniform(k_b2, (1,), minval=-bound2, maxval=bound2,
                            dtype=jnp.float32)
    f2, _ = jax.block_until_ready(risan_forward(x2, w2, b2, rho))
    assert f2.shape == (B2, 1)
    assert jnp.allclose(f2, x2 @ w2.T + b2, **TOL), "linear mismatch (tiled)"

    # --- Ragged batch -> Pallas edge-block handling (no wrapper pad). --------
    B3, F3 = 300, 32
    x3 = jax.random.normal(k_x3, (B3, F3), dtype=jnp.float32)
    f3, _ = jax.block_until_ready(risan_forward(x3, weight, bias, rho))
    assert f3.shape == (B3, 1)
    assert jnp.allclose(f3, x3 @ weight.T + bias, **TOL), "linear mismatch (ragged)"

    # --- Forced K-split path (tiny tile budget) exercises the accumulator. ---
    B4, F4 = 16, 256
    x4 = jax.random.normal(k_x4, (B4, F4), dtype=jnp.float32)
    k_w4, k_b4 = jax.random.split(k_b)
    bound4 = 1.0 / float(F4) ** 0.5
    w4 = jax.random.uniform(k_w4, (1, F4), minval=-bound4, maxval=bound4,
                            dtype=jnp.float32)
    b4 = jax.random.uniform(k_b4, (1,), minval=-bound4, maxval=bound4,
                            dtype=jnp.float32)
    f4, _ = jax.block_until_ready(
        risan_forward(x4, w4, b4, rho, _tile_bytes=4096))
    assert f4.shape == (B4, 1)
    assert jnp.allclose(f4, x4 @ w4.T + b4, **TOL), "linear mismatch (k-split)"

    # --- Exercise the infer path too. ----------------------------------------
    preds = jax.block_until_ready(risan_infer(x, weight, bias, rho))
    assert preds.shape == (B,)

    print("KERNEL_OK")
</pallas_src>

<mosaic_0001>
module attributes {stable_mosaic.version = 11 : i64} {
  func.func @_risan_linear_kernel(%arg0: i32, %arg1: memref<8x32xf32, #tpu.memory_space<vmem>>, %arg2: memref<32x1xf32, #tpu.memory_space<vmem>>, %arg3: memref<1x1xf32, #tpu.memory_space<smem>>, %arg4: memref<8x1xf32, #tpu.memory_space<vmem>>) attributes {dimension_semantics = [#tpu.dimension_semantics<parallel>], iteration_bounds = array<i64: 1>, scalar_prefetch = 0 : i64, scratch_operands = 0 : i64, tpu.core_type = #tpu.core_type<tc>, window_params = [{transform_indices = @transform_0, window_bounds = array<i64: 8, 32>}, {pipeline_mode = #tpu.pipeline_mode<synchronous>, transform_indices = @transform_1, window_bounds = array<i64: 32, 1>}, {transform_indices = @transform_2, window_bounds = array<i64: 1, 1>}, {transform_indices = @transform_3, window_bounds = array<i64: 8, 1>}]} {
    %c0 = arith.constant 0 : index
    %c0_0 = arith.constant 0 : index
    %0 = vector.load %arg1[%c0, %c0_0] : memref<8x32xf32, #tpu.memory_space<vmem>>, vector<8x32xf32>
    %c0_1 = arith.constant 0 : index
    %c0_2 = arith.constant 0 : index
    %1 = vector.load %arg2[%c0_1, %c0_2] : memref<32x1xf32, #tpu.memory_space<vmem>>, vector<32x1xf32>
    %cst = arith.constant dense<0.000000e+00> : vector<8x1xf32>
    %2 = tpu.matmul %0, %1, %cst {dimension_numbers = #tpu.dot_dimension_numbers<[1], [0], [0], [1], [0, 0, 1, 1], [], []>} : vector<8x32xf32>, vector<32x1xf32>, vector<8x1xf32> -> vector<8x1xf32>
    %c0_3 = arith.constant 0 : index
    %c0_4 = arith.constant 0 : index
    %3 = memref.load %arg3[%c0_3, %c0_4] : memref<1x1xf32, #tpu.memory_space<smem>>
    %4 = vector.broadcast %3 : f32 to vector<8x1xf32>
    %5 = arith.addf %2, %4 : vector<8x1xf32>
    %c0_5 = arith.constant 0 : index
    %c0_6 = arith.constant 0 : index
    %6 = vector.load %arg4[%c0_5, %c0_6] : memref<8x1xf32, #tpu.memory_space<vmem>>, vector<8x1xf32>
    tpu.vector_store %arg4[%c0_5, %c0_6], %5 {strides = array<i32>} : memref<8x1xf32, #tpu.memory_space<vmem>>, vector<8x1xf32>,
    return
  }
  func.func @transform_0(%arg0: i32) -> (i32, i32) {
    %c0_i32 = arith.constant 0 : i32
    %c0_i32_0 = arith.constant 0 : i32
    return %arg0, %c0_i32 : i32, i32
  }
  func.func @transform_1(%arg0: i32) -> (i32, i32) {
    %c0_i32 = arith.constant 0 : i32
    %c0_i32_0 = arith.constant 0 : i32
    %c0_i32_1 = arith.constant 0 : i32
    return %c0_i32, %c0_i32_0 : i32, i32
  }
  func.func @transform_2(%arg0: i32) -> (i32, i32) {
    %c0_i32 = arith.constant 0 : i32
    %c0_i32_0 = arith.constant 0 : i32
    %c0_i32_1 = arith.constant 0 : i32
    return %c0_i32, %c0_i32_0 : i32, i32
  }
  func.func @transform_3(%arg0: i32) -> (i32, i32) {
    %c0_i32 = arith.constant 0 : i32
    %c0_i32_0 = arith.constant 0 : i32
    return %arg0, %c0_i32 : i32, i32
  }
}

</mosaic_0001>

<llo_original>
// kernel: tpu_custom_call.1
$region0: #{tpu_custom_call.1}
  #allocation0 [shape = 'u32[]', space=smem, size = 0x4, offset = 0x4, fixed_abs, tag = 'smem constant byte address 0x4 - core index']
  #allocation1 [shape = 'u32[144,128]{1,0:T(1,128)}', space=vmem, size = 0x12000, scoped, tag = 'internal scratch']
  #allocation2 [shape = 'f32[1,1]{1,0:T(1,128)S(6)}', space=smem, size = 0x200, scoped, tag = 'scoped memory for tpu_custom_call.1']
  %s0 = inlined_call_operand.vmem [shape: f32[8,32], index: 0, kind: input, shape index: {}]
  %s1 = inlined_call_operand.vmem [shape: f32[32,1], index: 1, kind: input, shape index: {}]
  %s2 = inlined_call_operand.<no memory space> [shape: f32[1,1], index: 2, kind: input, shape index: {}]
  %s3 = inlined_call_operand.vmem [shape: f32[8,1], index: 3, kind: output, shape index: {}]
  %s4 = sld [smem:[#allocation0]]
  $region22: #{tpu_custom_call.1} parent=0
    _
  %s6 = ssub.s32 1, %s4
  %s7 = scalar_select 0, %s6, %s4
  %8 = sst [smem:[#allocation2]] %s2
  // Predicated region
  $region2: #{tpu_custom_call.1} parent=0 // pred_check
    _
  $region3: #{tpu_custom_call.1} parent=0 // pred_check_branch
    %10 = sbr.rel (0) target = $region5
  $region4: #{tpu_custom_call.1} parent=0 // pred_region
    _
  $region5: #{tpu_custom_call.1} parent=0 // pred_fallthru
    _
  // Predicated region
  $region6: #{tpu_custom_call.1} parent=0 // pred_check
    _
  $region7: #{tpu_custom_call.1} parent=0 // pred_check_branch
    %12 = sbr.rel (0) target = $region9
  $region8: #{tpu_custom_call.1} parent=0 // pred_region
    _
  $region9: #{tpu_custom_call.1} parent=0 // pred_fallthru
    _
  // Predicated region
  $region10: #{tpu_custom_call.1} parent=0 // pred_check
    _
  $region11: #{tpu_custom_call.1} parent=0 // pred_check_branch
    %14 = sbr.rel (0) target = $region13
  $region12: #{tpu_custom_call.1} parent=0 // pred_region
    _
  $region13: #{tpu_custom_call.1} parent=0 // pred_fallthru
    _
  %v15 = vld [vmem:[%s0] sm:$0xff]
  %v16 = vld [vmem:[%s1] sm:$0xff]
  %v17 = vld [vmem:[%s1 + $0x8] sm:$0xff]
  %v18 = vld [vmem:[%s1 + $0x10] sm:$0xff]
  %v19 = vld [vmem:[%s1 + $0x18] sm:$0xff]
  %s20 = sld [smem:[#allocation2]]
  %v21 = vstv %s20
  %vm22 = vcmask 261120
  %v24 = vsel %vm22, %v15, 0
  %26 = vmatprep.subr.mxu0 0.0
  %27 = vmatpush1.msra.mxu0 %v16
  %28 = vmatprep.subr.mxu0 0.0
  %29 = vmatpush1.msra.mxu0 %v17
  %30 = vmatprep.subr.mxu0 0.0
  %31 = vmatpush1.msra.mxu0 %v18
  %32 = vmatprep.subr.mxu0 0.0
  %33 = vmatpush1.msra.mxu0 %v19
  %34 = vmatprep.subr.mxu0 0.0
  %35 = vmatpush1.msra.mxu0 0.0
  %36 = vmatprep.subr.mxu0 0.0
  %37 = vmatpush1.msra.mxu0 0.0
  %38 = vmatprep.subr.mxu0 0.0
  %39 = vmatpush1.msra.mxu0 0.0
  %40 = vmatprep.subr.mxu0 0.0
  %41 = vmatpush1.msra.mxu0 0.0
  %42 = vmatprep.subr.mxu0 0.0
  %43 = vmatpush1.msra.mxu0 0.0
  %44 = vmatprep.subr.mxu0 0.0
  %45 = vmatpush1.msra.mxu0 0.0
  %46 = vmatprep.subr.mxu0 0.0
  %47 = vmatpush1.msra.mxu0 0.0
  %48 = vmatprep.subr.mxu0 0.0
  %49 = vmatpush1.msra.mxu0 0.0
  %50 = vmatprep.subr.mxu0 0.0
  %51 = vmatpush1.msra.mxu0 0.0
  %52 = vmatprep.subr.mxu0 0.0
  %53 = vmatpush1.msra.mxu0 0.0
  %54 = vmatprep.subr.mxu0 0.0
  %55 = vmatpush1.msra.mxu0 0.0
  %56 = vmatprep.subr.mxu0 0.0
  %57 = vmatpush1.msra.mxu0 0.0
  %58 = vmatprep.subr.mxu0 0.0
  %59 = vmatpush1.msra.mxu0 0.0
  %60 = vmatprep.subr.mxu0 0.0
  %61 = vmatpush1.msra.mxu0 0.0
  %62 = vmatprep.subr.mxu0 0.0
  %63 = vmatpush1.msra.mxu0 0.0
  %64 = vmatprep.subr.mxu0 0.0
  %65 = vmatpush1.msra.mxu0 0.0
  %66 = vmatprep.subr.mxu0 0.0
  %67 = vmatpush1.msra.mxu0 0.0
  %68 = vmatprep.subr.mxu0 0.0
  %69 = vmatpush1.msra.mxu0 0.0
  %70 = vmatprep.subr.mxu0 0.0
  %71 = vmatpush1.msra.mxu0 0.0
  %72 = vmatprep.subr.mxu0 0.0
  %73 = vmatpush1.msra.mxu0 0.0
  %74 = vmatprep.subr.mxu0 0.0
  %75 = vmatpush1.msra.mxu0 0.0
  %76 = vmatprep.subr.mxu0 0.0
  %77 = vmatpush1.msra.mxu0 0.0
  %78 = vmatprep.subr.mxu0 0.0
  %79 = vmatpush1.msra.mxu0 0.0
  %80 = vmatprep.subr.mxu0 0.0
  %81 = vmatpush1.msra.mxu0 0.0
  %82 = vmatprep.subr.mxu0 0.0
  %83 = vmatpush1.msra.mxu0 0.0
  %84 = vmatprep.subr.mxu0 0.0
  %85 = vmatpush1.msra.mxu0 0.0
  %86 = vmatprep.subr.mxu0 0.0
  %87 = vmatpush1.msra.mxu0 0.0
  %88 = vmatprep.subr.mxu0 0.0
  %89 = vmatpush1.msra.mxu0 0.0
  %90 = vmatprep.mubr.f32.mxu0 0.0
  %91 = vmatmul.mubr.f32.gmra.mrb[0].mxu0 %v24
  %v92 = vpop.f32.mrb[0].mxu0
  %v93 = vadd.f32 %v21, %v92
  %v94 = vpop.f32.mrb[0].mxu0
  %95 = vdwg.mxu0
  %vm96 = vcmask 7168
  %97 = vst.msk [vmem:[%s3] sm:$0xff] %vm96, %v93
  // Predicated region
  $region14: #{tpu_custom_call.1} parent=0 // pred_check
    _
  $region15: #{tpu_custom_call.1} parent=0 // pred_check_branch
    %99 = sbr.rel (0) target = $region17
  $region16: #{tpu_custom_call.1} parent=0 // pred_region
    _
  $region17: #{tpu_custom_call.1} parent=0 // pred_fallthru
    _
  // Predicated region
  $region18: #{tpu_custom_call.1} parent=0 // pred_check
    _
  $region19: #{tpu_custom_call.1} parent=0 // pred_check_branch
    %101 = sbr.rel (0) target = $region21
  $region20: #{tpu_custom_call.1} parent=0 // pred_region
    _
  $region21: #{tpu_custom_call.1} parent=0 // pred_fallthru
    _

</llo_original>
